<compile_context>
chip_gen: v7x
topology: tpu7x:2x2x1
jax: 0.10.0
libtpu: 0.0.40
codegen_flags: <defaults>
</compile_context>

<pallas_src>
import math

import jax
import jax.numpy as jnp
from jax.experimental import pallas as pl
from jax.experimental.pallas import tpu as pltpu

_SUB = 8                      # sublane granularity
_LANE = 128                   # lane granularity
_TARGET_BLOCK_BYTES = 4 * 1024 * 1024    # ~4 MiB per operand block
_VMEM_LIMIT_BYTES = 32 * 1024 * 1024     # 3 streams x 2 buffers x 4 MiB + slack


def _round_up(v, m):
    return ((v + m - 1) // m) * m


def _round_down(v, m):
    return (v // m) * m


def _choose_tiles(lead_total, M, T, itemsize):
    """Pick (tm, tt) sublane/lane tiles: ~4 MiB blocks, >=2 grid steps when possible."""
    # Lane tile: keep the full last dim unless it alone blows the budget.
    if T <= _LANE or T * _SUB * itemsize <= _TARGET_BLOCK_BYTES:
        tt = T
    else:
        tt = max(_LANE, _round_down(_TARGET_BLOCK_BYTES // (_SUB * itemsize), _LANE))
        if tt >= T:
            tt = T

    # Sublane tile sized to hit the block-bytes target.
    if tt == T:
        tm_cap = max(_SUB, _TARGET_BLOCK_BYTES // max(tt * itemsize, 1))
    else:
        tm_cap = _SUB
    if tm_cap >= M:
        tm = M                                  # full extent (always legal)
    else:
        tm = max(_SUB, _round_down(tm_cap, _SUB))
        if tm >= M:
            tm = M

    # Keep >= 2 grid steps so v7x megacore can split work (harmless elsewhere).
    grid_size = lead_total * pl.cdiv(M, tm) * pl.cdiv(T, tt)
    if grid_size < 2:
        if M > _SUB and tm == M:
            cand = _round_up(pl.cdiv(M, 2), _SUB)
            if cand < M:
                tm = cand
        if lead_total * pl.cdiv(M, tm) * pl.cdiv(T, tt) < 2 and tt == T and T > _LANE:
            cand = _round_up(pl.cdiv(T, 2), _LANE)
            if cand < T:
                tt = cand
    return tm, tt


def _pred_kernel(c_ref, x_ref, n_ref, o_ref):
    # c_ref: SMEM (2,) float32 -> [c_x1, c_n] (precomputed in the wrapper)
    c_x1 = c_ref[0]
    c_n = c_ref[1]
    o_ref[...] = (c_x1 * x_ref[...] - c_n * n_ref[...]).astype(o_ref.dtype)


def pred_forward(alphas_cumprod, x_1, noise_t, t_1, t_prev):
    """JAX/Pallas equivalent of Pred.forward.

    alphas_cumprod: (T_steps,) float32
    x_1, noise_t:   (..., M, T) float32 (e.g. (B, C, M, T))
    t_1, t_prev:    scalar int32 indices
    """
    assert x_1.shape == noise_t.shape
    orig_shape = x_1.shape

    # Scalar gather + coefficient math (glue, plain JAX; "+ x_1" folded into c_x1).
    a_t = alphas_cumprod[t_1].astype(jnp.float32)
    a_prev = alphas_cumprod[t_prev].astype(jnp.float32)
    a_t_sq = jnp.sqrt(a_t)
    a_prev_sq = jnp.sqrt(a_prev)
    diff = a_prev - a_t
    c_x1 = 1.0 + diff / (a_t_sq * (a_t_sq + a_prev_sq))
    c_n = diff / (a_t_sq * (jnp.sqrt((1.0 - a_prev) * a_t)
                            + jnp.sqrt((1.0 - a_t) * a_prev)))
    coeffs = jnp.stack([c_x1, c_n]).astype(jnp.float32)   # (2,) -> SMEM

    # Work on the native shape (no pad / flatten / slice copies).
    x = x_1
    n = noise_t
    if x.ndim < 2:
        pad_shape = (1,) * (2 - x.ndim) + x.shape
        x = x.reshape(pad_shape)
        n = n.reshape(pad_shape)
    shape = x.shape
    nlead = x.ndim - 2
    M, T = shape[-2], shape[-1]
    lead_total = int(math.prod(shape[:nlead])) if nlead else 1
    itemsize = x.dtype.itemsize

    tm, tt = _choose_tiles(lead_total, M, T, itemsize)

    grid = tuple(shape[:nlead]) + (pl.cdiv(M, tm), pl.cdiv(T, tt))
    block = (1,) * nlead + (tm, tt)

    def idx_map(*g):           # grid axes map 1:1 onto array block indices
        return g

    total = int(math.prod(shape))
    cost = pl.CostEstimate(flops=3 * total, transcendentals=0,
                           bytes_accessed=3 * total * itemsize)

    out = pl.pallas_call(
        _pred_kernel,
        out_shape=jax.ShapeDtypeStruct(shape, x.dtype),
        grid=grid,
        in_specs=[
            pl.BlockSpec(memory_space=pltpu.MemorySpace.SMEM),   # coeffs
            pl.BlockSpec(block, idx_map),                        # x_1
            pl.BlockSpec(block, idx_map),                        # noise_t
        ],
        out_specs=pl.BlockSpec(block, idx_map),
        compiler_params=pltpu.CompilerParams(
            dimension_semantics=("parallel",) * len(grid),
            vmem_limit_bytes=_VMEM_LIMIT_BYTES),
        cost_estimate=cost,
    )(coeffs, x, n)

    return out.reshape(orig_shape)


def pred_forward_ref(alphas_cumprod, x_1, noise_t, t_1, t_prev):
    """Pure-JAX reference mirroring the PyTorch module."""
    a_t = alphas_cumprod[t_1].reshape((1,) * x_1.ndim)
    a_prev = alphas_cumprod[t_prev].reshape((1,) * x_1.ndim)
    a_t_sq, a_prev_sq = jnp.sqrt(a_t), jnp.sqrt(a_prev)
    x_delta = (a_prev - a_t) * (
        1.0 / (a_t_sq * (a_t_sq + a_prev_sq)) * x_1
        - 1.0 / (a_t_sq * (jnp.sqrt((1.0 - a_prev) * a_t)
                           + jnp.sqrt((1.0 - a_t) * a_prev))) * noise_t
    )
    return x_1 + x_delta


if __name__ == "__main__":
    key = jax.random.PRNGKey(0)

    # deterministic diffusion schedule (synthetic, built in-script)
    num_steps = 16
    betas = jnp.linspace(1e-4, 2e-2, num_steps, dtype=jnp.float32)
    alphas_cumprod = jnp.cumprod(1.0 - betas)

    t_1 = jnp.int32(5)
    t_prev = jnp.int32(3)

    # shape 1: small NCHW-style (tiny lanes, full-extent blocks)
    # shape 2: odd-sized spectrogram-like (full-extent masked lanes, 2 grid steps)
    # shape 3: large M -> sublane tiling with a masked overhang block
    # shape 4: wide T, M == 8 -> lane-split path for the two-core heuristic
    shapes = [(2, 4, 16, 16), (2, 1, 520, 517), (1, 1, 2056, 640), (1, 1, 8, 4096)]
    for shape in shapes:
        k1, k2, key = jax.random.split(key, 3)
        x_1 = jax.random.normal(k1, shape, dtype=jnp.float32)
        noise_t = jax.random.normal(k2, shape, dtype=jnp.float32)

        out = pred_forward(alphas_cumprod, x_1, noise_t, t_1, t_prev)
        out = jax.block_until_ready(out)

        ref = pred_forward_ref(alphas_cumprod, x_1, noise_t, t_1, t_prev)
        assert out.shape == shape
        assert jnp.allclose(out, ref, atol=1e-5, rtol=1e-5), (
            f"mismatch vs reference for shape {shape}")

    print("KERNEL_OK")
</pallas_src>

<mosaic_0001>
module attributes {stable_mosaic.version = 11 : i64} {
  func.func @_pred_kernel(%arg0: i32, %arg1: i32, %arg2: i32, %arg3: i32, %arg4: memref<2xf32, #tpu.memory_space<smem>>, %arg5: memref<1x1x16x16xf32, #tpu.memory_space<vmem>>, %arg6: memref<1x1x16x16xf32, #tpu.memory_space<vmem>>, %arg7: memref<1x1x16x16xf32, #tpu.memory_space<vmem>>) attributes {dimension_semantics = [#tpu.dimension_semantics<parallel>, #tpu.dimension_semantics<parallel>, #tpu.dimension_semantics<parallel>, #tpu.dimension_semantics<parallel>], iteration_bounds = array<i64: 2, 4, 1, 1>, scalar_prefetch = 0 : i64, scratch_operands = 0 : i64, tpu.core_type = #tpu.core_type<tc>, window_params = [{transform_indices = @transform_0, window_bounds = array<i64: 2>}, {transform_indices = @transform_1, window_bounds = array<i64: 1, 1, 16, 16>}, {transform_indices = @transform_2, window_bounds = array<i64: 1, 1, 16, 16>}, {transform_indices = @transform_3, window_bounds = array<i64: 1, 1, 16, 16>}]} {
    %c0 = arith.constant 0 : index
    %0 = memref.load %arg4[%c0] : memref<2xf32, #tpu.memory_space<smem>>
    %c1 = arith.constant 1 : index
    %1 = memref.load %arg4[%c1] : memref<2xf32, #tpu.memory_space<smem>>
    %c0_0 = arith.constant 0 : index
    %c0_1 = arith.constant 0 : index
    %c0_2 = arith.constant 0 : index
    %c0_3 = arith.constant 0 : index
    %2 = vector.load %arg5[%c0_0, %c0_1, %c0_2, %c0_3] : memref<1x1x16x16xf32, #tpu.memory_space<vmem>>, vector<1x1x16x16xf32>
    %3 = vector.broadcast %0 : f32 to vector<1x1x16x16xf32>
    %4 = arith.mulf %3, %2 : vector<1x1x16x16xf32>
    %c0_4 = arith.constant 0 : index
    %c0_5 = arith.constant 0 : index
    %c0_6 = arith.constant 0 : index
    %c0_7 = arith.constant 0 : index
    %5 = vector.load %arg6[%c0_4, %c0_5, %c0_6, %c0_7] : memref<1x1x16x16xf32, #tpu.memory_space<vmem>>, vector<1x1x16x16xf32>
    %6 = vector.broadcast %1 : f32 to vector<1x1x16x16xf32>
    %7 = arith.mulf %6, %5 : vector<1x1x16x16xf32>
    %8 = arith.subf %4, %7 : vector<1x1x16x16xf32>
    %c0_8 = arith.constant 0 : index
    %c0_9 = arith.constant 0 : index
    %c0_10 = arith.constant 0 : index
    %c0_11 = arith.constant 0 : index
    %9 = vector.load %arg7[%c0_8, %c0_9, %c0_10, %c0_11] : memref<1x1x16x16xf32, #tpu.memory_space<vmem>>, vector<1x1x16x16xf32>
    tpu.vector_store %arg7[%c0_8, %c0_9, %c0_10, %c0_11], %8 {strides = array<i32>} : memref<1x1x16x16xf32, #tpu.memory_space<vmem>>, vector<1x1x16x16xf32>,
    return
  }
  func.func @transform_0(%arg0: i32, %arg1: i32, %arg2: i32, %arg3: i32) -> i32 {
    %c0_i32 = arith.constant 0 : i32
    %c0_i32_0 = arith.constant 0 : i32
    return %c0_i32 : i32
  }
  func.func @transform_1(%arg0: i32, %arg1: i32, %arg2: i32, %arg3: i32) -> (i32, i32, i32, i32) {
    %c0_i32 = arith.constant 0 : i32
    return %arg0, %arg1, %arg2, %arg3 : i32, i32, i32, i32
  }
  func.func @transform_2(%arg0: i32, %arg1: i32, %arg2: i32, %arg3: i32) -> (i32, i32, i32, i32) {
    %c0_i32 = arith.constant 0 : i32
    return %arg0, %arg1, %arg2, %arg3 : i32, i32, i32, i32
  }
  func.func @transform_3(%arg0: i32, %arg1: i32, %arg2: i32, %arg3: i32) -> (i32, i32, i32, i32) {
    %c0_i32 = arith.constant 0 : i32
    return %arg0, %arg1, %arg2, %arg3 : i32, i32, i32, i32
  }
}

</mosaic_0001>

<llo_original>
// kernel: tpu_custom_call.1
$region0: #{tpu_custom_call.1}
  #allocation0 [shape = 'u32[]', space=smem, size = 0x4, offset = 0x4, fixed_abs, tag = 'smem constant byte address 0x4 - core index']
  #allocation1 [shape = 'u32[144,128]{1,0:T(1,128)}', space=vmem, size = 0x12000, scoped, tag = 'internal scratch']
  %s0 = inlined_call_operand.hbm [shape: f32[2], index: 0, kind: input, shape index: {}]
  %s1 = inlined_call_operand.hbm [shape: f32[2,4,16,16], index: 1, kind: input, shape index: {}]
  %s2 = inlined_call_operand.hbm [shape: f32[2,4,16,16], index: 2, kind: input, shape index: {}]
  %s3 = inlined_call_operand.hbm [shape: f32[2,4,16,16], index: 3, kind: output, shape index: {}]
  %s4 = sld [smem:[#allocation0]]
  $region57: #{tpu_custom_call.1} parent=0
    _
  %s6 = ssub.s32 1, %s4
  %s7 = scalar_select 0, %s6, %s4
  $region1: #{tpu_custom_call.1} parent=0
    #allocation2 [shape = 'u8[512]{0}', space=smem, size = 0x200, scoped, tag = 'input window, operand 0, single buffered']
    #allocation3 [shape = 's32[2]{0}', space=sflag, size = 0x8, scoped, tag = 'scoped memory for tpu_custom_call.1']
    #allocation4 [shape = 's32[2]{0}', space=sflag, size = 0x8, scoped, tag = 'scoped memory for tpu_custom_call.1']
    #allocation5 [shape = 's32[2]{0}', space=sflag, size = 0x8, scoped, tag = 'scoped memory for tpu_custom_call.1']
    #allocation6 [shape = 'u8[16384]{0}', space=vmem, size = 0x4000, scoped, tag = 'input window, operand 1']
    #allocation7 [shape = 'u8[16384]{0}', space=vmem, size = 0x4000, scoped, tag = 'input window, operand 2']
    #allocation8 [shape = 's32[2]{0}', space=sflag, size = 0x8, scoped, tag = 'scoped memory for tpu_custom_call.1']
    #allocation9 [shape = 'u8[16384]{0}', space=vmem, size = 0x4000, scoped, tag = 'output window, operand 0']
    %8 = vsyncpa [#allocation5], 0
    %9 = vsyncpa [#allocation3], 0
    %s10 = scalar_lea.sflag [#allocation3], 1
    %11 = vsyncpa %s10, 0
    %12 = vsyncpa [#allocation8], 0
    %s13 = scalar_lea.sflag [#allocation8], 1
    %14 = vsyncpa %s13, 0
    %15 = vsyncpa [#allocation4], 0
    %s16 = scalar_lea.sflag [#allocation4], 1
    %17 = vsyncpa %s16, 0
    loop: start=0, step=1, limit=10
    $region2: #{tpu_custom_call.1} parent=1 // loop_pre_header
      _
    $region3: #{tpu_custom_call.1} parent=1 // loop_header
      %s19 = sphi 0, %s23
      %p20 = scmp.ge.s32.totalorder %s19, 10
      %s26 = sphi 0, %s52
      %s27 = sphi 0, %s48
      %s28 = sphi 0, %s44
      %s29 = sphi 0, %s40
      %s30 = sphi 0, %s26
      %s31 = sphi 0, %s27
      %s32 = sphi 0, %s28
      %s33 = sphi 0, %s29
      %s34 = sphi 0, %s30
      %s35 = sphi 0, %s31
      %s36 = sphi 0, %s32
      %s37 = sphi 0, %s33
      %s53 = sphi 0, %s53
      %s55 = sphi 0, %s53
      %s56 = sphi 0, %s55
      %s70 = sphi 0, %s56
      %s82 = sphi 0, %s84
      %s85 = sphi 0, %s82
      %s86 = sphi 0, %s85
      %s102 = sphi 0, %s86
      %s114 = sphi 0, %s116
      %s117 = sphi 0, %s114
      %s118 = sphi 0, %s117
      %s134 = sphi 0, %s118
      %s146 = sphi 0, %s148
      %s149 = sphi 0, %s146
      %s150 = sphi 0, %s149
      %s166 = sphi 0, %s150
    $region4: #{tpu_custom_call.1} parent=1 // loop_header_branch
      %22 = sbr.rel (%p20) target = $region8
    $region5: #{tpu_custom_call.1} parent=1 // loop_body
      %s24 = ssub.s32 %s19, 1
      %s25 = ssub.s32 %s19, 2
      %s38 = sadd.s32 1, %s29
      %p39 = scmp.ge.s32.totalorder %s38, 1
      %s40 = scalar_select %p39, 0, %s38
      %s41 = sadd.s32 1, %s28
      %s42 = scalar_select %p39, %s41, %s28
      %p43 = scmp.ge.s32.totalorder %s42, 1
      %s44 = scalar_select %p43, 0, %s42
      %s45 = sadd.s32 1, %s27
      %s46 = scalar_select %p43, %s45, %s27
      %p47 = scmp.ge.s32.totalorder %s46, 4
      %s48 = scalar_select %p47, 0, %s46
      %s49 = sadd.s32 1, %s26
      %s50 = scalar_select %p47, %s49, %s26
      %p51 = scmp.ge.s32.totalorder %s50, 2
      %s52 = scalar_select %p51, 0, %s50
      %s54 = sadd.s32 %s53, 1
      %p57 = scmp.eq.s32.totalorder %s19, 7
      %p58 = scmp.ne.s32.totalorder %s53, %s55
      %p59 = scmp.eq.s32.totalorder %s19, 0
      %p60 = por %p58, %p59
      %p61 = scmp.ne.s32.totalorder %s53, %s55
      %p62 = scmp.eq.s32.totalorder %s24, 7
      %p63 = por %p61, %p62
      %p64 = scmp.ne.s32.totalorder %s55, %s56
      %p65 = scmp.eq.s32.totalorder %s24, 0
      %p66 = por %p64, %p65
      %p67 = scmp.ne.s32.totalorder %s55, %s56
      %p68 = scmp.eq.s32.totalorder %s25, 7
      %p69 = por %p67, %p68
      %p71 = scmp.ne.s32.totalorder %s56, %s70
      %p72 = scmp.eq.s32.totalorder %s25, 0
      %p73 = por %p71, %p72
      %s74 = ssub.s32 %s26, %s52
      %s75 = ssub.s32 %s27, %s48
      %s76 = sor.u32 %s74, %s75
      %s77 = ssub.s32 %s28, %s44
      %s78 = sor.u32 %s76, %s77
      %s79 = ssub.s32 %s29, %s40
      %s80 = sor.u32 %s78, %s79
      %p81 = scmp.eq.s32.totalorder %s80, 0
      %s83 = sadd.s32 %s82, 1
      %s84 = scalar_select %p81, %s82, %s83
      %p87 = pneg %p81
      %p88 = scmp.eq.s32.totalorder %s19, 7
      %p89 = por %p87, %p88
      %p90 = scmp.ne.s32.totalorder %s82, %s85
      %p91 = scmp.eq.s32.totalorder %s19, 0
      %p92 = por %p90, %p91
      %p93 = scmp.ne.s32.totalorder %s82, %s85
      %p94 = scmp.eq.s32.totalorder %s24, 7
      %p95 = por %p93, %p94
      %p96 = scmp.ne.s32.totalorder %s85, %s86
      %p97 = scmp.eq.s32.totalorder %s24, 0
      %p98 = por %p96, %p97
      %p99 = scmp.ne.s32.totalorder %s85, %s86
      %p100 = scmp.eq.s32.totalorder %s25, 7
      %p101 = por %p99, %p100
      %p103 = scmp.ne.s32.totalorder %s86, %s102
      %p104 = scmp.eq.s32.totalorder %s25, 0
      %p105 = por %p103, %p104
      %s106 = ssub.s32 %s26, %s52
      %s107 = ssub.s32 %s27, %s48
      %s108 = sor.u32 %s106, %s107
      %s109 = ssub.s32 %s28, %s44
      %s110 = sor.u32 %s108, %s109
      %s111 = ssub.s32 %s29, %s40
      %s112 = sor.u32 %s110, %s111
      %p113 = scmp.eq.s32.totalorder %s112, 0
      %s115 = sadd.s32 %s114, 1
      %s116 = scalar_select %p113, %s114, %s115
      %p119 = pneg %p113
      %p120 = scmp.eq.s32.totalorder %s19, 7
      %p121 = por %p119, %p120
      %p122 = scmp.ne.s32.totalorder %s114, %s117
      %p123 = scmp.eq.s32.totalorder %s19, 0
      %p124 = por %p122, %p123
      %p125 = scmp.ne.s32.totalorder %s114, %s117
      %p126 = scmp.eq.s32.totalorder %s24, 7
      %p127 = por %p125, %p126
      %p128 = scmp.ne.s32.totalorder %s117, %s118
      %p129 = scmp.eq.s32.totalorder %s24, 0
      %p130 = por %p128, %p129
      %p131 = scmp.ne.s32.totalorder %s117, %s118
      %p132 = scmp.eq.s32.totalorder %s25, 7
      %p133 = por %p131, %p132
      %p135 = scmp.ne.s32.totalorder %s118, %s134
      %p136 = scmp.eq.s32.totalorder %s25, 0
      %p137 = por %p135, %p136
      %s138 = ssub.s32 %s26, %s52
      %s139 = ssub.s32 %s27, %s48
      %s140 = sor.u32 %s138, %s139
      %s141 = ssub.s32 %s28, %s44
      %s142 = sor.u32 %s140, %s141
      %s143 = ssub.s32 %s29, %s40
      %s144 = sor.u32 %s142, %s143
      %p145 = scmp.eq.s32.totalorder %s144, 0
      %s147 = sadd.s32 %s146, 1
      %s148 = scalar_select %p145, %s146, %s147
      %p151 = pneg %p145
      %p152 = scmp.eq.s32.totalorder %s19, 7
      %p153 = por %p151, %p152
      %p154 = scmp.ne.s32.totalorder %s146, %s149
      %p155 = scmp.eq.s32.totalorder %s19, 0
      %p156 = por %p154, %p155
      %p157 = scmp.ne.s32.totalorder %s146, %s149
      %p158 = scmp.eq.s32.totalorder %s24, 7
      %p159 = por %p157, %p158
      %p160 = scmp.ne.s32.totalorder %s149, %s150
      %p161 = scmp.eq.s32.totalorder %s24, 0
      %p162 = por %p160, %p161
      %p163 = scmp.ne.s32.totalorder %s149, %s150
      %p164 = scmp.eq.s32.totalorder %s25, 7
      %p165 = por %p163, %p164
      %p167 = scmp.ne.s32.totalorder %s150, %s166
      %p168 = scmp.eq.s32.totalorder %s25, 0
      %p169 = por %p167, %p168
      %p170 = scmp.le.s32.totalorder 1, %s19
      %p171 = scmp.lt.s32.totalorder %s19, 9
      %p172 = pnand %p170, %p171
      %p173 = pneg %p172
      // Predicated region
      $region9: #{tpu_custom_call.1} parent=5 // pred_check
        _
      $region10: #{tpu_custom_call.1} parent=5 // pred_check_branch
        %175 = sbr.rel (%p172) target = $region12
      $region11: #{tpu_custom_call.1} parent=5 // pred_region
        %s176 = ssub.s32 %s19, 1
        // Predicated region
        $region13: #{tpu_custom_call.1} parent=11 // pred_check
          %p177 = pneg %p66
        $region14: #{tpu_custom_call.1} parent=11 // pred_check_branch
          %179 = sbr.rel (%p177) target = $region16
        $region15: #{tpu_custom_call.1} parent=11 // pred_region
          %s181 = ssub.s32 16, 16
          %182 = vsyncadd [#allocation5], %s181
          %185 = dma.hbm_to_smem %s0, 16, [#allocation2], [#allocation5]
        $region16: #{tpu_custom_call.1} parent=11 // pred_fallthru
          _
      $region12: #{tpu_custom_call.1} parent=5 // pred_fallthru
        _
      %p186 = scmp.lt.s32.totalorder %s19, 8
      // Predicated region
      $region17: #{tpu_custom_call.1} parent=5 // pred_check
        %p187 = pneg %p186
      $region18: #{tpu_custom_call.1} parent=5 // pred_check_branch
        %189 = sbr.rel (%p187) target = $region20
      $region19: #{tpu_custom_call.1} parent=5 // pred_region
        // Predicated region
        $region21: #{tpu_custom_call.1} parent=19 // pred_check
          %p190 = pneg %p92
        $region22: #{tpu_custom_call.1} parent=19 // pred_check_branch
          %192 = sbr.rel (%p190) target = $region24
        $region23: #{tpu_custom_call.1} parent=19 // pred_region
          %s193 = sand.u32 %s82, 1
          %s194 = scalar_lea.sflag [#allocation3], %s193
          %s195 = sand.u32 %s82, 1
          %s196 = smul.addr %s195, 16
          %s197 = scalar_lea.vmem [#allocation6], %s196
          %s198 = smul.u32 2, %s28
          %s200 = ssub.s32 256, 256
          %201 = vsyncadd %s194, %s200
          %s202 = sadd.s32 %s29, %s198
          %s203 = smul.addr %s27, 2
          %s204 = sadd.s32 %s202, %s203
          %s205 = smul.addr %s26, 8
          %s206 = sadd.s32 %s204, %s205
          %s207 = smul.addr %s206, 128
          %s208 = scalar_lea.hbm %s1, %s207
          %s209 = sshll.u32 %s197, 4
          %s210 = int_to_ptr.vmem [resolvable:$true] %s209
          %215 = dma.hbm_to_vmem [thread:$0]  %s208, 256, %s210, %s194, 128, 128, 8
        $region24: #{tpu_custom_call.1} parent=19 // pred_fallthru
          _
        // Predicated region
        $region25: #{tpu_custom_call.1} parent=19 // pred_check
          %p216 = pneg %p124
        $region26: #{tpu_custom_call.1} parent=19 // pred_check_branch
          %218 = sbr.rel (%p216) target = $region28
        $region27: #{tpu_custom_call.1} parent=19 // pred_region
          %s219 = sand.u32 %s114, 1
          %s220 = scalar_lea.sflag [#allocation8], %s219
          %s221 = sand.u32 %s114, 1
          %s222 = smul.addr %s221, 16
          %s223 = scalar_lea.vmem [#allocation7], %s222
          %s224 = smul.u32 2, %s28
          %s226 = ssub.s32 256, 256
          %227 = vsyncadd %s220, %s226
          %s228 = sadd.s32 %s29, %s224
          %s229 = smul.addr %s27, 2
          %s230 = sadd.s32 %s228, %s229
          %s231 = smul.addr %s26, 8
          %s232 = sadd.s32 %s230, %s231
          %s233 = smul.addr %s232, 128
          %s234 = scalar_lea.hbm %s2, %s233
          %s235 = sshll.u32 %s223, 4
          %s236 = int_to_ptr.vmem [resolvable:$true] %s235
          %241 = dma.hbm_to_vmem [thread:$0]  %s234, 256, %s236, %s220, 128, 128, 8
        $region28: #{tpu_custom_call.1} parent=19 // pred_fallthru
          _
      $region20: #{tpu_custom_call.1} parent=5 // pred_fallthru
        _
      %p242 = scmp.le.s32.totalorder 1, %s19
      %p243 = scmp.lt.s32.totalorder %s19, 9
      %p244 = pnand %p242, %p243
      %p245 = pneg %p244
      // Predicated region
      $region29: #{tpu_custom_call.1} parent=5 // pred_check
        _
      $region30: #{tpu_custom_call.1} parent=5 // pred_check_branch
        %247 = sbr.rel (%p244) target = $region32
      $region31: #{tpu_custom_call.1} parent=5 // pred_region
        %s248 = ssub.s32 %s19, 1
        // Predicated region
        $region33: #{tpu_custom_call.1} parent=31 // pred_check
          %p249 = pneg %p66
        $region34: #{tpu_custom_call.1} parent=31 // pred_check_branch
          %251 = sbr.rel (%p249) target = $region36
        $region35: #{tpu_custom_call.1} parent=31 // pred_region
          %252 = dma.done [#allocation5], 16
        $region36: #{tpu_custom_call.1} parent=31 // pred_fallthru
          _
        %s253 = sand.u32 %s85, 1
        %s254 = scalar_lea.sflag [#allocation3], %s253
        %s255 = sand.u32 %s85, 1
        %s256 = smul.addr %s255, 16
        %s257 = scalar_lea.vmem [#allocation6], %s256
        // Predicated region
        $region37: #{tpu_custom_call.1} parent=31 // pred_check
          %p258 = pneg %p98
        $region38: #{tpu_custom_call.1} parent=31 // pred_check_branch
          %260 = sbr.rel (%p258) target = $region40
        $region39: #{tpu_custom_call.1} parent=31 // pred_region
          %261 = dma.done %s254, 256
        $region40: #{tpu_custom_call.1} parent=31 // pred_fallthru
          _
        %s262 = sand.u32 %s117, 1
        %s263 = scalar_lea.sflag [#allocation8], %s262
        %s264 = sand.u32 %s117, 1
        %s265 = smul.addr %s264, 16
        %s266 = scalar_lea.vmem [#allocation7], %s265
        // Predicated region
        $region41: #{tpu_custom_call.1} parent=31 // pred_check
          %p267 = pneg %p130
        $region42: #{tpu_custom_call.1} parent=31 // pred_check_branch
          %269 = sbr.rel (%p267) target = $region44
        $region43: #{tpu_custom_call.1} parent=31 // pred_region
          %270 = dma.done %s263, 256
        $region44: #{tpu_custom_call.1} parent=31 // pred_fallthru
          _
        %271 = sfence
        %p272 = pneg %p66
        %p273 = pneg %p63
        %s274 = sand.u32 %s85, 1
        %s275 = scalar_lea.sflag [#allocation3], %s274
        %s276 = sand.u32 %s85, 1
        %s277 = smul.addr %s276, 16
        %s278 = scalar_lea.vmem [#allocation6], %s277
        %p279 = pneg %p98
        %p280 = pneg %p95
        %s281 = sand.u32 %s117, 1
        %s282 = scalar_lea.sflag [#allocation8], %s281
        %s283 = sand.u32 %s117, 1
        %s284 = smul.addr %s283, 16
        %s285 = scalar_lea.vmem [#allocation7], %s284
        %p286 = pneg %p130
        %p287 = pneg %p127
        %p288 = pneg %p162
        %p289 = pneg %p159
        %s290 = sand.u32 %s149, 1
        %s291 = scalar_lea.sflag [#allocation4], %s290
        %s292 = sand.u32 %s149, 1
        %s293 = smul.addr %s292, 16
        %s294 = scalar_lea.vmem [#allocation9], %s293
        %s295 = smul.u32 2, %s32
        %s296 = smul.u32 2, %s32
        %s297 = smul.u32 2, %s32
        %s298 = sld [smem:[#allocation2]]
        %s299 = sld [smem:[#allocation2 + $0x1]]
        %v300 = vld [vmem:[%s257] sm:$0xff]
        %v301 = vld [vmem:[%s257 + $0x8] sm:$0xff]
        %v302 = vstv %s298
        %v303 = vmul.f32 %v302, %v300
        %v304 = vmul.f32 %v302, %v301
        %v305 = vld [vmem:[%s266] sm:$0xff]
        %v306 = vld [vmem:[%s266 + $0x8] sm:$0xff]
        %v307 = vstv %s299
        %v308 = vmul.f32 %v307, %v305
        %v309 = vmul.f32 %v307, %v306
        %v310 = vsub.f32 %v303, %v308
        %v311 = vsub.f32 %v304, %v309
        %vm312 = vcmask 130048
        %313 = vst.msk [vmem:[%s294] sm:$0xff] %vm312, %v310
        %314 = vst.msk [vmem:[%s294 + $0x8] sm:$0xff] %vm312, %v311
        %s315 = sand.u32 %s149, 1
        %s316 = scalar_lea.sflag [#allocation4], %s315
        %s317 = sand.u32 %s149, 1
        %s318 = smul.addr %s317, 16
        %s319 = scalar_lea.vmem [#allocation9], %s318
        // Predicated region
        $region45: #{tpu_custom_call.1} parent=31 // pred_check
          %p320 = pneg %p159
        $region46: #{tpu_custom_call.1} parent=31 // pred_check_branch
          %322 = sbr.rel (%p320) target = $region48
        $region47: #{tpu_custom_call.1} parent=31 // pred_region
          %s323 = smul.u32 2, %s32
          %s325 = ssub.s32 256, 256
          %326 = vsyncadd %s316, %s325
          %s327 = sadd.s32 %s33, %s323
          %s328 = smul.addr %s31, 2
          %s329 = sadd.s32 %s327, %s328
          %s330 = smul.addr %s30, 8
          %s331 = sadd.s32 %s329, %s330
          %s332 = smul.addr %s331, 128
          %s333 = scalar_lea.hbm %s3, %s332
          %s334 = sshll.u32 %s319, 4
          %s335 = int_to_ptr.vmem [resolvable:$true] %s334
          %340 = dma.vmem_to_hbm [thread:$0]  %s335, 256, %s333, %s316, 128, 128, 8
        $region48: #{tpu_custom_call.1} parent=31 // pred_fallthru
          _
      $region32: #{tpu_custom_call.1} parent=5 // pred_fallthru
        _
      %p341 = scmp.le.s32.totalorder 2, %s19
      // Predicated region
      $region49: #{tpu_custom_call.1} parent=5 // pred_check
        %p342 = pneg %p341
      $region50: #{tpu_custom_call.1} parent=5 // pred_check_branch
        %344 = sbr.rel (%p342) target = $region52
      $region51: #{tpu_custom_call.1} parent=5 // pred_region
        %s345 = ssub.s32 %s19, 2
        // Predicated region
        $region53: #{tpu_custom_call.1} parent=51 // pred_check
          %p346 = pneg %p165
        $region54: #{tpu_custom_call.1} parent=51 // pred_check_branch
          %348 = sbr.rel (%p346) target = $region56
        $region55: #{tpu_custom_call.1} parent=51 // pred_region
          %s349 = sand.u32 %s150, 1
          %s350 = scalar_lea.sflag [#allocation4], %s349
          %s351 = sand.u32 %s150, 1
          %s352 = smul.addr %s351, 16
          %s353 = scalar_lea.vmem [#allocation9], %s352
          %354 = dma.done %s350, 256
        $region56: #{tpu_custom_call.1} parent=51 // pred_fallthru
          _
      $region52: #{tpu_custom_call.1} parent=5 // pred_fallthru
        _
    $region6: #{tpu_custom_call.1} parent=1 // loop_footer
      %s23 = sadd.s32 1, %s19
    $region7: #{tpu_custom_call.1} parent=1 // loop_footer_branch
      %18 = sbr.rel target = $region3
    $region8: #{tpu_custom_call.1} parent=1 // loop_exit
      _
    %355 = vsyncpa [#allocation3], 1
    %s356 = scalar_lea.sflag [#allocation3], 1
    %357 = vsyncpa %s356, 1
    %358 = vsyncpa [#allocation8], 1
    %s359 = scalar_lea.sflag [#allocation8], 1
    %360 = vsyncpa %s359, 1
    %361 = vsyncpa [#allocation4], 1
    %s362 = scalar_lea.sflag [#allocation4], 1
    %363 = vsyncpa %s362, 1
    %364 = vsyncpa [#allocation5], 1
    %s365 = scalar_lea.sflag [#allocation5], 1
    %366 = vsyncpa %s365, 1

</llo_original>
